<compile_context>
chip_gen: v7x
topology: tpu7x:2x2x1
jax: 0.10.0
libtpu: 0.0.40
codegen_flags: <defaults>
</compile_context>

<pallas_src>
import jax
import jax.numpy as jnp
from jax.experimental import pallas as pl
from jax.experimental.pallas import tpu as pltpu


_FUSED_MAX_NODES = 1024          # whole-stack single-call path below this
_X_RESIDENT_BYTES = 8 * 1024 * 1024


def _round_up(x, m):
    return ((x + m - 1) // m) * m


# ------------------------- tiled aggregation kernel ---------------------------
def _agg_body(a_ref, x_ref, s_ref, b_ref, w_ref, out_ref, acc_ref, *,
              apply_relu, rescale_out, x_resident, tile_k):
    """acc += A_tile @ X_tile; last k-step: out = finalize(acc)."""
    k = pl.program_id(1)

    @pl.when(k == 0)
    def _init():
        acc_ref[...] = jnp.zeros_like(acc_ref)

    # Raw 0/1 int8 adjacency -> bf16 on the VPU (exact), bf16 MXU matmul,
    # f32 accumulation.
    a = a_ref[...].astype(jnp.float32).astype(jnp.bfloat16)
    if x_resident:
        start = pl.multiple_of(k * tile_k, tile_k)
        x = x_ref[pl.ds(start, tile_k), :]
    else:
        x = x_ref[...]
    acc_ref[...] += jnp.dot(a, x, preferred_element_type=jnp.float32)

    @pl.when(k == pl.num_programs(1) - 1)
    def _finalize():
        s = s_ref[...]                     # (tile_row, 1) f32, d^-1/2 (0 on pad)
        z = acc_ref[...] * s               # row half of D^-1/2 A D^-1/2
        if w_ref is not None:
            z = jnp.dot(z.astype(jnp.bfloat16), w_ref[...],
                        preferred_element_type=jnp.float32)
        z = z + b_ref[...]
        if apply_relu:
            z = jnp.maximum(z, 0.0)
        if rescale_out:
            z = z * s                      # pre-fold NEXT layer's column norm
        out_ref[...] = z.astype(out_ref.dtype)


def gcn_aggregate(a_pad, x_pad, s_pad, b_pad, w_pad, *, apply_relu, rescale_out,
                  out_dtype, tile_row, tile_k):
    """out = finalize(A_raw @ X), tiled over (row tiles, k tiles)."""
    n_pad = a_pad.shape[0]
    f_x = x_pad.shape[1]
    f_out = w_pad.shape[1] if w_pad is not None else f_x
    grid = (n_pad // tile_row, n_pad // tile_k)

    # Keep X fully VMEM-resident when small: removes the grid[0]-fold re-stream.
    x_resident = (n_pad * f_x * 2) <= _X_RESIDENT_BYTES

    a_spec = pl.BlockSpec((tile_row, tile_k), lambda i, k: (i, k))
    if x_resident:
        x_spec = pl.BlockSpec((n_pad, f_x), lambda i, k: (0, 0))      # resident
    else:
        x_spec = pl.BlockSpec((tile_k, f_x), lambda i, k: (k, 0))
    s_spec = pl.BlockSpec((tile_row, 1), lambda i, k: (i, 0))
    b_spec = pl.BlockSpec((1, f_out), lambda i, k: (0, 0))            # resident
    out_spec = pl.BlockSpec((tile_row, f_out), lambda i, k: (i, 0))   # acc over k

    flops = 2 * n_pad * n_pad * f_x
    bytes_accessed = (a_pad.size                                      # int8
                      + (1 if x_resident else grid[0]) * x_pad.size * 2
                      + n_pad * f_out * jnp.dtype(out_dtype).itemsize
                      + s_pad.size * 4 + b_pad.size * 4)

    if w_pad is not None:
        flops += 2 * n_pad * f_x * f_out
        bytes_accessed += w_pad.size * 2
        w_spec = pl.BlockSpec((f_x, f_out), lambda i, k: (0, 0))      # resident

        def kernel(a_ref, x_ref, s_ref, b_ref, w_ref, out_ref, acc_ref):
            _agg_body(a_ref, x_ref, s_ref, b_ref, w_ref, out_ref, acc_ref,
                      apply_relu=apply_relu, rescale_out=rescale_out,
                      x_resident=x_resident, tile_k=tile_k)

        in_specs = [a_spec, x_spec, s_spec, b_spec, w_spec]
        operands = (a_pad, x_pad, s_pad, b_pad, w_pad)
    else:
        def kernel(a_ref, x_ref, s_ref, b_ref, out_ref, acc_ref):
            _agg_body(a_ref, x_ref, s_ref, b_ref, None, out_ref, acc_ref,
                      apply_relu=apply_relu, rescale_out=rescale_out,
                      x_resident=x_resident, tile_k=tile_k)

        in_specs = [a_spec, x_spec, s_spec, b_spec]
        operands = (a_pad, x_pad, s_pad, b_pad)

    return pl.pallas_call(
        kernel,
        out_shape=jax.ShapeDtypeStruct((n_pad, f_out), out_dtype),
        grid_spec=pltpu.PrefetchScalarGridSpec(
            num_scalar_prefetch=0,
            grid=grid,
            in_specs=in_specs,
            out_specs=out_spec,
            scratch_shapes=[pltpu.VMEM((tile_row, f_x), jnp.float32)]),
        compiler_params=pltpu.CompilerParams(
            dimension_semantics=("parallel", "arbitrary"),
            vmem_limit_bytes=32 * 1024 * 1024),
        cost_estimate=pl.CostEstimate(
            flops=int(flops), transcendentals=0,
            bytes_accessed=int(bytes_accessed)),
    )(*operands)


# --------------------------- pre-transform kernel ------------------------------
def _transform_kernel(x_ref, w_ref, out_ref):
    out_ref[...] = jnp.dot(x_ref[...], w_ref[...],
                           preferred_element_type=jnp.float32).astype(out_ref.dtype)


def gcn_pre_transform(x_pad, w_pad, *, tile_row):
    """XW = X @ W (bf16 in, bf16 W resident, bf16 out).  Used when the padded
    output dim < padded input dim so the N^2 aggregation contracts over the
    smaller feature dim."""
    n_pad, f_in = x_pad.shape
    f_out = w_pad.shape[1]
    return pl.pallas_call(
        _transform_kernel,
        out_shape=jax.ShapeDtypeStruct((n_pad, f_out), jnp.bfloat16),
        grid_spec=pltpu.PrefetchScalarGridSpec(
            num_scalar_prefetch=0,
            grid=(n_pad // tile_row,),
            in_specs=[pl.BlockSpec((tile_row, f_in), lambda i: (i, 0)),
                      pl.BlockSpec((f_in, f_out), lambda i: (0, 0))],  # resident
            out_specs=pl.BlockSpec((tile_row, f_out), lambda i: (i, 0))),
        compiler_params=pltpu.CompilerParams(
            dimension_semantics=("parallel",)),
        cost_estimate=pl.CostEstimate(
            flops=int(2 * n_pad * f_in * f_out), transcendentals=0,
            bytes_accessed=int(x_pad.size * 2 + w_pad.size * 2 + n_pad * f_out * 2)),
    )(x_pad, w_pad)


# --------------------------- fused small-graph path ----------------------------
def _full_spec(shape):
    nd = len(shape)
    return pl.BlockSpec(shape, lambda i, _nd=nd: (0,) * _nd)


def gcn_fused_stack(a_pad, s_pad, x0_pad, ws, bs):
    """Whole layer stack in one pallas_call; everything VMEM-resident."""
    n_pad = a_pad.shape[0]
    n_layer = len(ws)
    f_out = ws[-1].shape[1]
    pre = [w.shape[1] < w.shape[0] for w in ws]   # A@(XW) vs (A@X)@W per layer

    def kernel(*refs):
        a_ref, s_ref, x_ref = refs[0], refs[1], refs[2]
        wb = refs[3:3 + 2 * n_layer]
        out_ref = refs[3 + 2 * n_layer]

        a = a_ref[...].astype(jnp.float32).astype(jnp.bfloat16)   # exact 0/1
        s = s_ref[...]
        x = x_ref[...]                                            # bf16, s-scaled
        z = None
        for i in range(n_layer):
            w = wb[2 * i][...]
            b = wb[2 * i + 1][...]
            last = (i == n_layer - 1)
            if pre[i]:
                xw = jnp.dot(x, w, preferred_element_type=jnp.float32)
                agg = jnp.dot(a, xw.astype(jnp.bfloat16),
                              preferred_element_type=jnp.float32)
                z = agg * s + b
            else:
                agg = jnp.dot(a, x, preferred_element_type=jnp.float32)
                z = jnp.dot((agg * s).astype(jnp.bfloat16), w,
                            preferred_element_type=jnp.float32) + b
            if not last:
                z = jnp.maximum(z, 0.0)
                x = (z * s).astype(jnp.bfloat16)   # fold next layer's col norm
        out_ref[...] = z.astype(out_ref.dtype)

    operands = [a_pad, s_pad, x0_pad]
    for w, b in zip(ws, bs):
        operands += [w, b]

    return pl.pallas_call(
        kernel,
        out_shape=jax.ShapeDtypeStruct((n_pad, f_out), jnp.float32),
        grid_spec=pltpu.PrefetchScalarGridSpec(
            num_scalar_prefetch=0,
            grid=(1,),
            in_specs=[_full_spec(op.shape) for op in operands],
            out_specs=_full_spec((n_pad, f_out))),
        compiler_params=pltpu.CompilerParams(
            dimension_semantics=("arbitrary",)),
    )(*operands)


# ------------------------------- GNN wrapper -----------------------------------
def prepare_gnn_inputs(adj, features):
    """One-time per-graph layout prep (hoisted out of the jitted forward):
    padded raw int8 adjacency, d^-1/2 column (0 on padded rows), and
    x0 = bf16(diag(d^-1/2) @ features), padded."""
    n, f_in = features.shape
    if n <= _FUSED_MAX_NODES:
        n_pad = _round_up(n, 128)
    else:
        n_pad = _round_up(n, 512)
    f_in_pad = _round_up(f_in, 128)

    adj_f = adj.astype(jnp.float32)
    deg = jnp.sum(adj_f, axis=1)
    s = jnp.where(deg > 0, 1.0 / jnp.sqrt(jnp.maximum(deg, 1.0)), 0.0)

    a_pad = jnp.zeros((n_pad, n_pad), jnp.int8).at[:n, :n].set(
        adj_f.astype(jnp.int8))
    s_pad = jnp.zeros((n_pad, 1), jnp.float32).at[:n, 0].set(s)
    x0 = (features.astype(jnp.float32) * s[:, None]).astype(jnp.bfloat16)
    x0_pad = jnp.zeros((n_pad, f_in_pad), jnp.bfloat16).at[:n, :f_in].set(x0)
    return a_pad, s_pad, x0_pad


def gnn_forward_prepared(a_pad, s_pad, x0_pad, params):
    """Padded jit-friendly core.  params: list of (W_i (fi,fo) f32, b_i (fo,) f32)."""
    n_pad = a_pad.shape[0]
    n_layer = len(params)

    # Pad + pre-cast weights to bf16 ONCE (resident in VMEM inside the kernels).
    ws, bs = [], []
    f_prev = x0_pad.shape[1]
    for (w, b) in params:
        f_out_pad = _round_up(w.shape[1], 128)
        w_pad = jnp.zeros((f_prev, f_out_pad), jnp.float32)
        w_pad = w_pad.at[:w.shape[0], :w.shape[1]].set(w)
        ws.append(w_pad.astype(jnp.bfloat16))
        b_pad = jnp.zeros((1, f_out_pad), jnp.float32).at[0, :b.shape[0]].set(b)
        bs.append(b_pad)
        f_prev = f_out_pad

    if n_pad <= _FUSED_MAX_NODES:
        # Whole problem fits in VMEM: single fused pallas_call for the stack.
        return gcn_fused_stack(a_pad, s_pad, x0_pad, ws, bs)

    # Tiled streaming path: decoupled row / k tiles; big A blocks.
    tile_row = 512
    if n_pad % 2048 == 0:
        tile_k = 2048
    elif n_pad % 1024 == 0:
        tile_k = 1024
    else:
        tile_k = 512

    x = x0_pad
    for i in range(n_layer):
        last = (i == n_layer - 1)
        w, b = ws[i], bs[i]
        out_dtype = jnp.float32 if last else jnp.bfloat16
        if w.shape[1] < w.shape[0]:
            # A @ (X W): contract the N^2 matmul over the smaller F_out.
            xw = gcn_pre_transform(x, w, tile_row=tile_row)
            x = gcn_aggregate(a_pad, xw, s_pad, b, None,
                              apply_relu=not last, rescale_out=not last,
                              out_dtype=out_dtype,
                              tile_row=tile_row, tile_k=tile_k)
        else:
            # (A @ X) @ W: contract over the smaller F_in; W applied in finalize.
            x = gcn_aggregate(a_pad, x, s_pad, b, w,
                              apply_relu=not last, rescale_out=not last,
                              out_dtype=out_dtype,
                              tile_row=tile_row, tile_k=tile_k)
    return x


_gnn_forward_prepared_jit = jax.jit(gnn_forward_prepared)


def gnn_forward(adj, features, params):
    """Convenience wrapper: adj is the RAW 0/1 adjacency (with self loops)."""
    n = features.shape[0]
    dim = params[-1][0].shape[1]
    prep = prepare_gnn_inputs(adj, features)          # layout, hoisted out of jit
    out_pad = _gnn_forward_prepared_jit(*prep, params)
    return out_pad[:n, :dim]


def gnn_reference(a_hat, features, params):
    """Pure-JAX f32 reference (matches the PyTorch module's GraphConv stack)."""
    h = features
    for i, (w, b) in enumerate(params):
        h = a_hat @ h @ w + b
        if i != len(params) - 1:
            h = jnp.maximum(h, 0.0)
    return h


# ------------------------------ param / graph glue ------------------------------
def init_gcn_params(key, n_layer, feature_len, dim):
    """Deterministic xavier-uniform weights + zero bias (DGL GraphConv init)."""
    params = []
    for i in range(n_layer):
        in_feats = feature_len if i == 0 else dim
        key, wkey = jax.random.split(key)
        limit = jnp.sqrt(6.0 / (in_feats + dim))
        w = jax.random.uniform(wkey, (in_feats, dim), dtype=jnp.float32,
                               minval=-limit, maxval=limit)
        b = jnp.zeros((dim,), dtype=jnp.float32)
        params.append((w, b))
    return params


def build_graph(key, num_nodes, edge_prob):
    """Deterministic random undirected 0/1 adjacency with self loops."""
    upper = jax.random.bernoulli(
        key, p=edge_prob, shape=(num_nodes, num_nodes)).astype(jnp.float32)
    upper = jnp.triu(upper, k=1)
    return upper + upper.T + jnp.eye(num_nodes, dtype=jnp.float32)


def normalized_adjacency(adj):
    deg = jnp.sum(adj, axis=1)
    d_inv_sqrt = 1.0 / jnp.sqrt(deg)
    return adj * d_inv_sqrt[:, None] * d_inv_sqrt[None, :]


# ------------------------------------ main ---------------------------------------
if __name__ == "__main__":
    def run_case(key, n_layer, feature_len, dim, num_nodes, edge_prob=0.4):
        k_graph, k_feat, k_param = jax.random.split(key, 3)
        adj = build_graph(k_graph, num_nodes, edge_prob)
        features = jax.random.normal(k_feat, (num_nodes, feature_len),
                                     dtype=jnp.float32)
        params = init_gcn_params(k_param, n_layer, feature_len, dim)

        # One-time layout prep hoisted out of the jitted per-call forward.
        prep = jax.block_until_ready(prepare_gnn_inputs(adj, features))
        out_pad = _gnn_forward_prepared_jit(*prep, params)
        out_pad = jax.block_until_ready(out_pad)
        out = out_pad[:num_nodes, :dim]

        assert out.shape == (num_nodes, dim)
        assert out.dtype == jnp.float32
        ref = gnn_reference(normalized_adjacency(adj), features, params)
        err = float(jnp.max(jnp.abs(out - ref)))
        assert bool(jnp.allclose(out, ref, atol=0.15, rtol=0.1)), (
            f"kernel output deviates from pure-JAX reference (max abs err {err})")
        return out

    root = jax.random.PRNGKey(0)
    k1, k2, k3 = jax.random.split(root, 3)

    # GNN(gnn='gcn', n_layer=2, feature_len=16, dim=32), 8-node graph:
    # fused small-graph path, (A@X)@W branch.
    run_case(k1, n_layer=2, feature_len=16, dim=32, num_nodes=8)

    # Wider input features, 24-node graph: fused path, A@(XW) branch on layer 0.
    run_case(k2, n_layer=2, feature_len=256, dim=32, num_nodes=24)

    # Larger graph: tiled streaming path (n_pad=3072, tile_row=512, tile_k=1024,
    # int8 A stream, resident X, multi-step k accumulation).
    run_case(k3, n_layer=2, feature_len=256, dim=32, num_nodes=3000,
             edge_prob=0.05)

    # TODO(synk): 'gat'/'sage'/'tag'/'sgc' branches of the module (other DGL conv
    # types) and the unused SumPooling layer are not kernelized; only the 'gcn'
    # (GraphConv) stack is implemented.
    print("KERNEL_OK")
</pallas_src>

<mosaic_0001>
module attributes {stable_mosaic.version = 11 : i64} {
  func.func @kernel(%arg0: i32, %arg1: memref<128x128xi8, #tpu.memory_space<vmem>>, %arg2: memref<128x1xf32, #tpu.memory_space<vmem>>, %arg3: memref<128x128xbf16, #tpu.memory_space<vmem>>, %arg4: memref<128x128xbf16, #tpu.memory_space<vmem>>, %arg5: memref<1x128xf32, #tpu.memory_space<vmem>>, %arg6: memref<128x128xbf16, #tpu.memory_space<vmem>>, %arg7: memref<1x128xf32, #tpu.memory_space<vmem>>, %arg8: memref<128x128xf32, #tpu.memory_space<vmem>>) attributes {dimension_semantics = [#tpu.dimension_semantics<arbitrary>], iteration_bounds = array<i64: 1>, scalar_prefetch = 0 : i64, scratch_operands = 0 : i64, tpu.core_type = #tpu.core_type<tc>, window_params = [{pipeline_mode = #tpu.pipeline_mode<synchronous>, transform_indices = @transform_0, window_bounds = array<i64: 128, 128>}, {pipeline_mode = #tpu.pipeline_mode<synchronous>, transform_indices = @transform_1, window_bounds = array<i64: 128, 1>}, {pipeline_mode = #tpu.pipeline_mode<synchronous>, transform_indices = @transform_2, window_bounds = array<i64: 128, 128>}, {pipeline_mode = #tpu.pipeline_mode<synchronous>, transform_indices = @transform_3, window_bounds = array<i64: 128, 128>}, {pipeline_mode = #tpu.pipeline_mode<synchronous>, transform_indices = @transform_4, window_bounds = array<i64: 1, 128>}, {pipeline_mode = #tpu.pipeline_mode<synchronous>, transform_indices = @transform_5, window_bounds = array<i64: 128, 128>}, {pipeline_mode = #tpu.pipeline_mode<synchronous>, transform_indices = @transform_6, window_bounds = array<i64: 1, 128>}, {pipeline_mode = #tpu.pipeline_mode<synchronous>, transform_indices = @transform_7, window_bounds = array<i64: 128, 128>}]} {
    %c0 = arith.constant 0 : index
    %c0_0 = arith.constant 0 : index
    %0 = vector.load %arg1[%c0, %c0_0] : memref<128x128xi8, #tpu.memory_space<vmem>>, vector<128x128xi8>
    %1 = arith.sitofp %0 : vector<128x128xi8> to vector<128x128xf32>
    %2 = arith.truncf %1 : vector<128x128xf32> to vector<128x128xbf16>
    %c0_1 = arith.constant 0 : index
    %c0_2 = arith.constant 0 : index
    %3 = vector.load %arg2[%c0_1, %c0_2] : memref<128x1xf32, #tpu.memory_space<vmem>>, vector<128x1xf32>
    %c0_3 = arith.constant 0 : index
    %c0_4 = arith.constant 0 : index
    %4 = vector.load %arg3[%c0_3, %c0_4] : memref<128x128xbf16, #tpu.memory_space<vmem>>, vector<128x128xbf16>
    %c0_5 = arith.constant 0 : index
    %c0_6 = arith.constant 0 : index
    %5 = vector.load %arg4[%c0_5, %c0_6] : memref<128x128xbf16, #tpu.memory_space<vmem>>, vector<128x128xbf16>
    %c0_7 = arith.constant 0 : index
    %c0_8 = arith.constant 0 : index
    %6 = vector.load %arg5[%c0_7, %c0_8] : memref<1x128xf32, #tpu.memory_space<vmem>>, vector<1x128xf32>
    %cst = arith.constant dense<0.000000e+00> : vector<128x128xf32>
    %7 = tpu.matmul %2, %4, %cst {dimension_numbers = #tpu.dot_dimension_numbers<[1], [0], [0], [1], [0, 0, 1, 1], [], []>} : vector<128x128xbf16>, vector<128x128xbf16>, vector<128x128xf32> -> vector<128x128xf32>
    %8 = vector.broadcast %3 : vector<128x1xf32> to vector<128x128xf32>
    %9 = arith.mulf %7, %8 : vector<128x128xf32>
    %10 = arith.truncf %9 : vector<128x128xf32> to vector<128x128xbf16>
    %cst_9 = arith.constant dense<0.000000e+00> : vector<128x128xf32>
    %11 = tpu.matmul %10, %5, %cst_9 {dimension_numbers = #tpu.dot_dimension_numbers<[1], [0], [0], [1], [0, 0, 1, 1], [], []>} : vector<128x128xbf16>, vector<128x128xbf16>, vector<128x128xf32> -> vector<128x128xf32>
    %12 = vector.broadcast %6 : vector<1x128xf32> to vector<128x128xf32>
    %13 = arith.addf %11, %12 : vector<128x128xf32>
    %cst_10 = arith.constant 0.000000e+00 : f32
    %14 = vector.broadcast %cst_10 : f32 to vector<128x128xf32>
    %15 = arith.maximumf %13, %14 : vector<128x128xf32>
    %16 = vector.broadcast %3 : vector<128x1xf32> to vector<128x128xf32>
    %17 = arith.mulf %15, %16 : vector<128x128xf32>
    %18 = arith.truncf %17 : vector<128x128xf32> to vector<128x128xbf16>
    %c0_11 = arith.constant 0 : index
    %c0_12 = arith.constant 0 : index
    %19 = vector.load %arg6[%c0_11, %c0_12] : memref<128x128xbf16, #tpu.memory_space<vmem>>, vector<128x128xbf16>
    %c0_13 = arith.constant 0 : index
    %c0_14 = arith.constant 0 : index
    %20 = vector.load %arg7[%c0_13, %c0_14] : memref<1x128xf32, #tpu.memory_space<vmem>>, vector<1x128xf32>
    %cst_15 = arith.constant dense<0.000000e+00> : vector<128x128xf32>
    %21 = tpu.matmul %2, %18, %cst_15 {dimension_numbers = #tpu.dot_dimension_numbers<[1], [0], [0], [1], [0, 0, 1, 1], [], []>} : vector<128x128xbf16>, vector<128x128xbf16>, vector<128x128xf32> -> vector<128x128xf32>
    %22 = vector.broadcast %3 : vector<128x1xf32> to vector<128x128xf32>
    %23 = arith.mulf %21, %22 : vector<128x128xf32>
    %24 = arith.truncf %23 : vector<128x128xf32> to vector<128x128xbf16>
    %cst_16 = arith.constant dense<0.000000e+00> : vector<128x128xf32>
    %25 = tpu.matmul %24, %19, %cst_16 {dimension_numbers = #tpu.dot_dimension_numbers<[1], [0], [0], [1], [0, 0, 1, 1], [], []>} : vector<128x128xbf16>, vector<128x128xbf16>, vector<128x128xf32> -> vector<128x128xf32>
    %26 = vector.broadcast %20 : vector<1x128xf32> to vector<128x128xf32>
    %27 = arith.addf %25, %26 : vector<128x128xf32>
    %c0_17 = arith.constant 0 : index
    %c0_18 = arith.constant 0 : index
    %28 = vector.load %arg8[%c0_17, %c0_18] : memref<128x128xf32, #tpu.memory_space<vmem>>, vector<128x128xf32>
    tpu.vector_store %arg8[%c0_17, %c0_18], %27 {strides = array<i32>} : memref<128x128xf32, #tpu.memory_space<vmem>>, vector<128x128xf32>,
    return
  }
  func.func @transform_0(%arg0: i32) -> (i32, i32) {
    %c0_i32 = arith.constant 0 : i32
    %c0_i32_0 = arith.constant 0 : i32
    %c0_i32_1 = arith.constant 0 : i32
    return %c0_i32, %c0_i32_0 : i32, i32
  }
  func.func @transform_1(%arg0: i32) -> (i32, i32) {
    %c0_i32 = arith.constant 0 : i32
    %c0_i32_0 = arith.constant 0 : i32
    %c0_i32_1 = arith.constant 0 : i32
    return %c0_i32, %c0_i32_0 : i32, i32
  }
  func.func @transform_2(%arg0: i32) -> (i32, i32) {
    %c0_i32 = arith.constant 0 : i32
    %c0_i32_0 = arith.constant 0 : i32
    %c0_i32_1 = arith.constant 0 : i32
    return %c0_i32, %c0_i32_0 : i32, i32
  }
  func.func @transform_3(%arg0: i32) -> (i32, i32) {
    %c0_i32 = arith.constant 0 : i32
    %c0_i32_0 = arith.constant 0 : i32
    %c0_i32_1 = arith.constant 0 : i32
    return %c0_i32, %c0_i32_0 : i32, i32
  }
  func.func @transform_4(%arg0: i32) -> (i32, i32) {
    %c0_i32 = arith.constant 0 : i32
    %c0_i32_0 = arith.constant 0 : i32
    %c0_i32_1 = arith.constant 0 : i32
    return %c0_i32, %c0_i32_0 : i32, i32
  }
  func.func @transform_5(%arg0: i32) -> (i32, i32) {
    %c0_i32 = arith.constant 0 : i32
    %c0_i32_0 = arith.constant 0 : i32
    %c0_i32_1 = arith.constant 0 : i32
    return %c0_i32, %c0_i32_0 : i32, i32
  }
  func.func @transform_6(%arg0: i32) -> (i32, i32) {
    %c0_i32 = arith.constant 0 : i32
    %c0_i32_0 = arith.constant 0 : i32
    %c0_i32_1 = arith.constant 0 : i32
    return %c0_i32, %c0_i32_0 : i32, i32
  }
  func.func @transform_7(%arg0: i32) -> (i32, i32) {
    %c0_i32 = arith.constant 0 : i32
    %c0_i32_0 = arith.constant 0 : i32
    %c0_i32_1 = arith.constant 0 : i32
    return %c0_i32, %c0_i32_0 : i32, i32
  }
}

</mosaic_0001>

<llo_original>
// kernel: gnn_forward_prepared.1
$region0: #{gnn_forward_prepared.1}
  #allocation0 [shape = 'u32[]', space=smem, size = 0x4, offset = 0x4, fixed_abs, tag = 'smem constant byte address 0x4 - core index']
  #allocation1 [shape = 'u32[144,128]{1,0:T(1,128)}', space=vmem, size = 0x12000, scoped, tag = 'internal scratch']
  %s0 = inlined_call_operand.vmem [shape: s8[128,128], index: 0, kind: input, shape index: {}]
  %s1 = inlined_call_operand.vmem [shape: f32[128,1], index: 1, kind: input, shape index: {}]
  %s2 = inlined_call_operand.vmem [shape: bf16[128,128], index: 2, kind: input, shape index: {}]
  %s3 = inlined_call_operand.vmem [shape: bf16[128,128], index: 3, kind: input, shape index: {}]
  %s4 = inlined_call_operand.vmem [shape: f32[1,128], index: 4, kind: input, shape index: {}]
  %s5 = inlined_call_operand.vmem [shape: bf16[128,128], index: 5, kind: input, shape index: {}]
  %s6 = inlined_call_operand.vmem [shape: f32[1,128], index: 6, kind: input, shape index: {}]
  %s7 = inlined_call_operand.hbm [shape: f32[128,128], index: 7, kind: output, shape index: {}]
  %s8 = sld [smem:[#allocation0]]
  $region38: #{gnn_forward_prepared.1} parent=0
    _
  %s10 = ssub.s32 1, %s8
  %s11 = scalar_select 0, %s10, %s8
  $region1: #{gnn_forward_prepared.1} parent=0
    #allocation2 [shape = 'u8[65536]{0}', space=vmem, size = 0x10000, scoped, tag = 'output window, operand 0, single buffered']
    #allocation3 [shape = 's32[1]{0}', space=sflag, size = 0x4, scoped, tag = 'scoped memory for gnn_forward_prepared.1']
    %12 = vsyncpa [#allocation3], 0
    // Predicated region
    $region2: #{gnn_forward_prepared.1} parent=1 // pred_check
      _
    $region3: #{gnn_forward_prepared.1} parent=1 // pred_check_branch
      %14 = sbr.rel (0) target = $region5
    $region4: #{gnn_forward_prepared.1} parent=1 // pred_region
      _
    $region5: #{gnn_forward_prepared.1} parent=1 // pred_fallthru
      _
    // Predicated region
    $region6: #{gnn_forward_prepared.1} parent=1 // pred_check
      _
    $region7: #{gnn_forward_prepared.1} parent=1 // pred_check_branch
      %16 = sbr.rel (0) target = $region9
    $region8: #{gnn_forward_prepared.1} parent=1 // pred_region
      _
    $region9: #{gnn_forward_prepared.1} parent=1 // pred_fallthru
      _
    // Predicated region
    $region10: #{gnn_forward_prepared.1} parent=1 // pred_check
      _
    $region11: #{gnn_forward_prepared.1} parent=1 // pred_check_branch
      %18 = sbr.rel (0) target = $region13
    $region12: #{gnn_forward_prepared.1} parent=1 // pred_region
      _
    $region13: #{gnn_forward_prepared.1} parent=1 // pred_fallthru
      _
    // Predicated region
    $region14: #{gnn_forward_prepared.1} parent=1 // pred_check
      _
    $region15: #{gnn_forward_prepared.1} parent=1 // pred_check_branch
      %20 = sbr.rel (0) target = $region17
    $region16: #{gnn_forward_prepared.1} parent=1 // pred_region
      _
    $region17: #{gnn_forward_prepared.1} parent=1 // pred_fallthru
      _
    // Predicated region
    $region18: #{gnn_forward_prepared.1} parent=1 // pred_check
      _
    $region19: #{gnn_forward_prepared.1} parent=1 // pred_check_branch
      %22 = sbr.rel (0) target = $region21
    $region20: #{gnn_forward_prepared.1} parent=1 // pred_region
      _
    $region21: #{gnn_forward_prepared.1} parent=1 // pred_fallthru
      _
    // Predicated region
    $region22: #{gnn_forward_prepared.1} parent=1 // pred_check
      _
    $region23: #{gnn_forward_prepared.1} parent=1 // pred_check_branch
      %24 = sbr.rel (0) target = $region25
    $region24: #{gnn_forward_prepared.1} parent=1 // pred_region
      _
    $region25: #{gnn_forward_prepared.1} parent=1 // pred_fallthru
      _
    // Predicated region
    $region26: #{gnn_forward_prepared.1} parent=1 // pred_check
      _
    $region27: #{gnn_forward_prepared.1} parent=1 // pred_check_branch
      %26 = sbr.rel (0) target = $region29
    $region28: #{gnn_forward_prepared.1} parent=1 // pred_region
      _
    $region29: #{gnn_forward_prepared.1} parent=1 // pred_fallthru
      _
    %v28 = vld [vmem:[%s0] sm:$0xff]
    %v29 = vld [vmem:[%s0 + $0x8] sm:$0xff]
    %v30 = vld [vmem:[%s0 + $0x10] sm:$0xff]
    %v31 = vld [vmem:[%s0 + $0x18] sm:$0xff]
    %v32 = vunpack.c.l.s8.bf16 %v28
    %v33 = vunpack.c.h.s8.bf16 %v28
    %v34 = vunpack.c.l.s8.bf16 %v29
    %v35 = vunpack.c.h.s8.bf16 %v29
    %v36 = vunpack.c.l.s8.bf16 %v30
    %v37 = vunpack.c.h.s8.bf16 %v30
    %v38 = vunpack.c.l.s8.bf16 %v31
    %v39 = vunpack.c.h.s8.bf16 %v31
    %v40 = vld [vmem:[%s1] sm:$0xff]
    %v41 = vld [vmem:[%s1 + $0x8] sm:$0xff]
    %v42 = vld [vmem:[%s1 + $0x10] sm:$0xff]
    %v43 = vld [vmem:[%s1 + $0x18] sm:$0xff]
    %v44 = vld [vmem:[%s1 + $0x20] sm:$0xff]
    %v45 = vld [vmem:[%s1 + $0x28] sm:$0xff]
    %v46 = vld [vmem:[%s1 + $0x30] sm:$0xff]
    %v47 = vld [vmem:[%s1 + $0x38] sm:$0xff]
    %v48 = vld [vmem:[%s1 + $0x40] sm:$0xff]
    %v49 = vld [vmem:[%s1 + $0x48] sm:$0xff]
    %v50 = vld [vmem:[%s1 + $0x50] sm:$0xff]
    %v51 = vld [vmem:[%s1 + $0x58] sm:$0xff]
    %v52 = vld [vmem:[%s1 + $0x60] sm:$0xff]
    %v53 = vld [vmem:[%s1 + $0x68] sm:$0xff]
    %v54 = vld [vmem:[%s1 + $0x70] sm:$0xff]
    %v55 = vld [vmem:[%s1 + $0x78] sm:$0xff]
    %v56 = vld [vmem:[%s2] sm:$0xf]
    %v57 = vld [vmem:[%s2 + $0x4] sm:$0xf]
    %v58 = vld [vmem:[%s2 + $0x8] sm:$0xf]
    %v59 = vld [vmem:[%s2 + $0xc] sm:$0xf]
    %v60 = vld [vmem:[%s2 + $0x10] sm:$0xf]
    %v61 = vld [vmem:[%s2 + $0x14] sm:$0xf]
    %v62 = vld [vmem:[%s2 + $0x18] sm:$0xf]
    %v63 = vld [vmem:[%s2 + $0x1c] sm:$0xf]
    %v64 = vld [vmem:[%s2 + $0x20] sm:$0xf]
    %v65 = vld [vmem:[%s2 + $0x24] sm:$0xf]
    %v66 = vld [vmem:[%s2 + $0x28] sm:$0xf]
    %v67 = vld [vmem:[%s2 + $0x2c] sm:$0xf]
    %v68 = vld [vmem:[%s2 + $0x30] sm:$0xf]
    %v69 = vld [vmem:[%s2 + $0x34] sm:$0xf]
    %v70 = vld [vmem:[%s2 + $0x38] sm:$0xf]
    %v71 = vld [vmem:[%s2 + $0x3c] sm:$0xf]
    %v72 = vld [vmem:[%s3] sm:$0xf]
    %v73 = vld [vmem:[%s3 + $0x4] sm:$0xf]
    %v74 = vld [vmem:[%s3 + $0x8] sm:$0xf]
    %v75 = vld [vmem:[%s3 + $0xc] sm:$0xf]
    %v76 = vld [vmem:[%s3 + $0x10] sm:$0xf]
    %v77 = vld [vmem:[%s3 + $0x14] sm:$0xf]
    %v78 = vld [vmem:[%s3 + $0x18] sm:$0xf]
    %v79 = vld [vmem:[%s3 + $0x1c] sm:$0xf]
    %v80 = vld [vmem:[%s3 + $0x20] sm:$0xf]
    %v81 = vld [vmem:[%s3 + $0x24] sm:$0xf]
    %v82 = vld [vmem:[%s3 + $0x28] sm:$0xf]
    %v83 = vld [vmem:[%s3 + $0x2c] sm:$0xf]
    %v84 = vld [vmem:[%s3 + $0x30] sm:$0xf]
    %v85 = vld [vmem:[%s3 + $0x34] sm:$0xf]
    %v86 = vld [vmem:[%s3 + $0x38] sm:$0xf]
    %v87 = vld [vmem:[%s3 + $0x3c] sm:$0xf]
    %v88 = vld [vmem:[%s4] sm:$0x1]
    %v105 = vunpack.c.l.b16 %v56
    %v106 = vunpack.c.l.b16 %v57
    %v107 = vunpack.c.l.b16 %v58
    %v108 = vunpack.c.l.b16 %v59
    %v109 = vunpack.c.l.b16 %v60
    %v110 = vunpack.c.l.b16 %v61
    %v111 = vunpack.c.l.b16 %v62
    %v112 = vunpack.c.l.b16 %v63
    %v113 = vunpack.c.l.b16 %v64
    %v114 = vunpack.c.l.b16 %v65
    %v115 = vunpack.c.l.b16 %v66
    %v116 = vunpack.c.l.b16 %v67
    %v117 = vunpack.c.l.b16 %v68
    %v118 = vunpack.c.l.b16 %v69
    %v119 = vunpack.c.l.b16 %v70
    %v120 = vunpack.c.l.b16 %v71
    %v121 = vpack.c.b16 %v106, %v105
    %v122 = vpack.c.b16 %v108, %v107
    %v123 = vpack.c.b16 %v110, %v109
    %v124 = vpack.c.b16 %v112, %v111
    %v125 = vpack.c.b16 %v114, %v113
    %v126 = vpack.c.b16 %v116, %v115
    %v127 = vpack.c.b16 %v118, %v117
    %v128 = vpack.c.b16 %v120, %v119
    %137 = vmatprep.subr.bf16.mxu0 0
    %138 = vmatpush1.bf16.msra.mxu0 %v121
    %139 = vmatprep.subr.bf16.mxu0 0
    %140 = vmatpush1.bf16.msra.mxu0 %v122
    %141 = vmatprep.subr.bf16.mxu0 0
    %142 = vmatpush1.bf16.msra.mxu0 %v123
    %143 = vmatprep.subr.bf16.mxu0 0
    %144 = vmatpush1.bf16.msra.mxu0 %v124
    %145 = vmatprep.subr.bf16.mxu0 0
    %146 = vmatpush1.bf16.msra.mxu0 %v125
    %147 = vmatprep.subr.bf16.mxu0 0
    %148 = vmatpush1.bf16.msra.mxu0 %v126
    %149 = vmatprep.subr.bf16.mxu0 0
    %150 = vmatpush1.bf16.msra.mxu0 %v127
    %151 = vmatprep.subr.bf16.mxu0 0
    %152 = vmatpush1.bf16.msra.mxu0 %v128
    %153 = vmatprep.subr.bf16.mxu0 0
    %154 = vmatpush1.bf16.msra.mxu0 0
    %155 = vmatprep.subr.bf16.mxu0 0
    %156 = vmatpush1.bf16.msra.mxu0 0
    %157 = vmatprep.subr.bf16.mxu0 0
    %158 = vmatpush1.bf16.msra.mxu0 0
    %159 = vmatprep.subr.bf16.mxu0 0
    %160 = vmatpush1.bf16.msra.mxu0 0
    %161 = vmatprep.subr.bf16.mxu0 0
    %162 = vmatpush1.bf16.msra.mxu0 0
    %163 = vmatprep.subr.bf16.mxu0 0
    %164 = vmatpush1.bf16.msra.mxu0 0
    %165 = vmatprep.subr.bf16.mxu0 0
    %166 = vmatpush1.bf16.msra.mxu0 0
    %167 = vmatprep.subr.bf16.mxu0 0
    %168 = vmatpush1.bf16.msra.mxu0 0
    %169 = vmatprep.mubr.bf16.mxu0 0
    %170 = vmatmul.mubr.bf16.gmra.mrb[0].mxu0 %v32
    %v171 = vpop.f32.mrb[0].mxu0
    %v172 = vadd.f32 0.0, %v171
    %v173 = vpop.f32.mrb[0].mxu0
    %v174 = vpop.f32.mrb[0].mxu0
    %v175 = vadd.f32 0.0, %v174
    %v176 = vpop.f32.mrb[0].mxu0
    %177 = vmatprep.mubr.bf16.mxu0 0
    %178 = vmatmul.mubr.bf16.gmra.mrb[0].mxu0 %v33
    %v179 = vpop.f32.mrb[0].mxu0
    %v180 = vadd.f32 0.0, %v179
    %v181 = vpop.f32.mrb[0].mxu0
    %v182 = vpop.f32.mrb[0].mxu0
    %v183 = vadd.f32 0.0, %v182
    %v184 = vpop.f32.mrb[0].mxu0
    %185 = vmatprep.mubr.bf16.mxu0 0
    %186 = vmatmul.mubr.bf16.gmra.mrb[0].mxu0 %v34
    %v187 = vpop.f32.mrb[0].mxu0
    %v188 = vadd.f32 0.0, %v187
    %v189 = vpop.f32.mrb[0].mxu0
    %v190 = vpop.f32.mrb[0].mxu0
    %v191 = vadd.f32 0.0, %v190
    %v192 = vpop.f32.mrb[0].mxu0
    %193 = vmatprep.mubr.bf16.mxu0 0
    %194 = vmatmul.mubr.bf16.gmra.mrb[0].mxu0 %v35
    %v195 = vpop.f32.mrb[0].mxu0
    %v196 = vadd.f32 0.0, %v195
    %v197 = vpop.f32.mrb[0].mxu0
    %v198 = vpop.f32.mrb[0].mxu0
    %v199 = vadd.f32 0.0, %v198
    %v200 = vpop.f32.mrb[0].mxu0
    %201 = vmatprep.mubr.bf16.mxu0 0
    %202 = vmatmul.mubr.bf16.gmra.mrb[0].mxu0 %v36
    %v203 = vpop.f32.mrb[0].mxu0
    %v204 = vadd.f32 0.0, %v203
    %v205 = vpop.f32.mrb[0].mxu0
    %v206 = vpop.f32.mrb[0].mxu0
    %v207 = vadd.f32 0.0, %v206
    %v208 = vpop.f32.mrb[0].mxu0
    %209 = vmatprep.mubr.bf16.mxu0 0
    %210 = vmatmul.mubr.bf16.gmra.mrb[0].mxu0 %v37
    %v211 = vpop.f32.mrb[0].mxu0
    %v212 = vadd.f32 0.0, %v211
    %v213 = vpop.f32.mrb[0].mxu0
    %v214 = vpop.f32.mrb[0].mxu0
    %v215 = vadd.f32 0.0, %v214
    %v216 = vpop.f32.mrb[0].mxu0
    %217 = vmatprep.mubr.bf16.mxu0 0
    %218 = vmatmul.mubr.bf16.gmra.mrb[0].mxu0 %v38
    %v219 = vpop.f32.mrb[0].mxu0
    %v220 = vadd.f32 0.0, %v219
    %v221 = vpop.f32.mrb[0].mxu0
    %v222 = vpop.f32.mrb[0].mxu0
    %v223 = vadd.f32 0.0, %v222
    %v224 = vpop.f32.mrb[0].mxu0
    %225 = vmatprep.mubr.bf16.mxu0 0
    %226 = vmatmul.mubr.bf16.gmra.mrb[0].mxu0 %v39
    %v227 = vpop.f32.mrb[0].mxu0
    %v228 = vadd.f32 0.0, %v227
    %v229 = vpop.f32.mrb[0].mxu0
    %v230 = vpop.f32.mrb[0].mxu0
    %v231 = vadd.f32 0.0, %v230
    %v232 = vpop.f32.mrb[0].mxu0
    %233 = vdwg.mxu0
    %235 = vset.pattern.permute.xlu0 0
    %236 = vperm.xlu0 %235, %v40
    %v237 = vpop.permute.xlu0 %236
    %240 = vset.pattern.permute.xlu0 0
    %241 = vperm.xlu0 %240, %v41
    %v242 = vpop.permute.xlu0 %241
    %245 = vset.pattern.permute.xlu0 0
    %246 = vperm.xlu0 %245, %v42
    %v247 = vpop.permute.xlu0 %246
    %250 = vset.pattern.permute.xlu0 0
    %251 = vperm.xlu0 %250, %v43
    %v252 = vpop.permute.xlu0 %251
    %255 = vset.pattern.permute.xlu0 0
    %256 = vperm.xlu0 %255, %v44
    %v257 = vpop.permute.xlu0 %256
    %260 = vset.pattern.permute.xlu0 0
    %261 = vperm.xlu0 %260, %v45
    %v262 = vpop.permute.xlu0 %261
    %265 = vset.pattern.permute.xlu0 0
    %266 = vperm.xlu0 %265, %v46
    %v267 = vpop.permute.xlu0 %266
    %270 = vset.pattern.permute.xlu0 0
    %271 = vperm.xlu0 %270, %v47
    %v272 = vpop.permute.xlu0 %271
    %275 = vset.pattern.permute.xlu0 0
    %276 = vperm.xlu0 %275, %v48
    %v277 = vpop.permute.xlu0 %276
    %280 = vset.pattern.permute.xlu0 0
    %281 = vperm.xlu0 %280, %v49
    %v282 = vpop.permute.xlu0 %281
    %285 = vset.pattern.permute.xlu0 0
    %286 = vperm.xlu0 %285, %v50
    %v287 = vpop.permute.xlu0 %286
    %290 = vset.pattern.permute.xlu0 0
    %291 = vperm.xlu0 %290, %v51
    %v292 = vpop.permute.xlu0 %291
    %295 = vset.pattern.permute.xlu0 0
    %296 = vperm.xlu0 %295, %v52
    %v297 = vpop.permute.xlu0 %296
    %300 = vset.pattern.permute.xlu0 0
    %301 = vperm.xlu0 %300, %v53
    %v302 = vpop.permute.xlu0 %301
    %305 = vset.pattern.permute.xlu0 0
    %306 = vperm.xlu0 %305, %v54
    %v307 = vpop.permute.xlu0 %306
    %310 = vset.pattern.permute.xlu0 0
    %311 = vperm.xlu0 %310, %v55
    %v312 = vpop.permute.xlu0 %311
    %v314 = vmul.f32 %v172, %v237
    %v315 = vmul.f32 %v175, %v242
    %v316 = vmul.f32 %v180, %v247
    %v317 = vmul.f32 %v183, %v252
    %v318 = vmul.f32 %v188, %v257
    %v319 = vmul.f32 %v191, %v262
    %v320 = vmul.f32 %v196, %v267
    %v321 = vmul.f32 %v199, %v272
    %v322 = vmul.f32 %v204, %v277
    %v323 = vmul.f32 %v207, %v282
    %v324 = vmul.f32 %v212, %v287
    %v325 = vmul.f32 %v215, %v292
    %v326 = vmul.f32 %v220, %v297
    %v327 = vmul.f32 %v223, %v302
    %v328 = vmul.f32 %v228, %v307
    %v329 = vmul.f32 %v231, %v312
    %v330 = vpack.c.bf16 %v315, %v314
    %v331 = vpack.c.bf16 %v317, %v316
    %v332 = vpack.c.bf16 %v319, %v318
    %v333 = vpack.c.bf16 %v321, %v320
    %v334 = vpack.c.bf16 %v323, %v322
    %v335 = vpack.c.bf16 %v325, %v324
    %v336 = vpack.c.bf16 %v327, %v326
    %v337 = vpack.c.bf16 %v329, %v328
    %v339 = vlaneseq
    %v340 = vshrl.u32 %v339, 7
    %v341 = vsub.s32 0, %v340
    %v342 = vrot.slane %v88, %v341
    %v360 = vunpack.c.l.b16 %v72
    %v361 = vunpack.c.l.b16 %v73
    %v362 = vunpack.c.l.b16 %v74
    %v363 = vunpack.c.l.b16 %v75
    %v364 = vunpack.c.l.b16 %v76
    %v365 = vunpack.c.l.b16 %v77
    %v366 = vunpack.c.l.b16 %v78
    %v367 = vunpack.c.l.b16 %v79
    %v368 = vunpack.c.l.b16 %v80
    %v369 = vunpack.c.l.b16 %v81
    %v370 = vunpack.c.l.b16 %v82
    %v371 = vunpack.c.l.b16 %v83
    %v372 = vunpack.c.l.b16 %v84
    %v373 = vunpack.c.l.b16 %v85
    %v374 = vunpack.c.l.b16 %v86
    %v375 = vunpack.c.l.b16 %v87
    %v376 = vpack.c.b16 %v361, %v360
    %v377 = vpack.c.b16 %v363, %v362
    %v378 = vpack.c.b16 %v365, %v364
    %v379 = vpack.c.b16 %v367, %v366
    %v380 = vpack.c.b16 %v369, %v368
    %v381 = vpack.c.b16 %v371, %v370
    %v382 = vpack.c.b16 %v373, %v372
    %v383 = vpack.c.b16 %v375, %v374
    %392 = vmatprep.subr.bf16.mxu0 0
    %393 = vmatpush1.bf16.msra.mxu0 %v376
    %394 = vmatprep.subr.bf16.mxu0 0
    %395 = vmatpush1.bf16.msra.mxu0 %v377
    %396 = vmatprep.subr.bf16.mxu0 0
    %397 = vmatpush1.bf16.msra.mxu0 %v378
    %398 = vmatprep.subr.bf16.mxu0 0
    %399 = vmatpush1.bf16.msra.mxu0 %v379
    %400 = vmatprep.subr.bf16.mxu0 0
    %401 = vmatpush1.bf16.msra.mxu0 %v380
    %402 = vmatprep.subr.bf16.mxu0 0
    %403 = vmatpush1.bf16.msra.mxu0 %v381
    %404 = vmatprep.subr.bf16.mxu0 0
    %405 = vmatpush1.bf16.msra.mxu0 %v382
    %406 = vmatprep.subr.bf16.mxu0 0
    %407 = vmatpush1.bf16.msra.mxu0 %v383
    %408 = vmatprep.subr.bf16.mxu0 0
    %409 = vmatpush1.bf16.msra.mxu0 0
    %410 = vmatprep.subr.bf16.mxu0 0
    %411 = vmatpush1.bf16.msra.mxu0 0
    %412 = vmatprep.subr.bf16.mxu0 0
    %413 = vmatpush1.bf16.msra.mxu0 0
    %414 = vmatprep.subr.bf16.mxu0 0
    %415 = vmatpush1.bf16.msra.mxu0 0
    %416 = vmatprep.subr.bf16.mxu0 0
    %417 = vmatpush1.bf16.msra.mxu0 0
    %418 = vmatprep.subr.bf16.mxu0 0
    %419 = vmatpush1.bf16.msra.mxu0 0
    %420 = vmatprep.subr.bf16.mxu0 0
    %421 = vmatpush1.bf16.msra.mxu0 0
    %422 = vmatprep.subr.bf16.mxu0 0
    %423 = vmatpush1.bf16.msra.mxu0 0
    %424 = vmatprep.mubr.bf16.mxu0 0
    %425 = vmatmul.mubr.bf16.gmra.mrb[0].mxu0 %v330
    %v426 = vpop.f32.mrb[0].mxu0
    %v427 = vadd.f32 %v342, %v426
    %v428 = vpop.f32.mrb[0].mxu0
    %v429 = vpop.f32.mrb[0].mxu0
    %v430 = vadd.f32 %v342, %v429
    %v431 = vpop.f32.mrb[0].mxu0
    %432 = vmatprep.mubr.bf16.mxu0 0
    %433 = vmatmul.mubr.bf16.gmra.mrb[0].mxu0 %v331
    %v434 = vpop.f32.mrb[0].mxu0
    %v435 = vadd.f32 %v342, %v434
    %v436 = vpop.f32.mrb[0].mxu0
    %v437 = vpop.f32.mrb[0].mxu0
    %v438 = vadd.f32 %v342, %v437
    %v439 = vpop.f32.mrb[0].mxu0
    %440 = vmatprep.mubr.bf16.mxu0 0
    %441 = vmatmul.mubr.bf16.gmra.mrb[0].mxu0 %v332
    %v442 = vpop.f32.mrb[0].mxu0
    %v443 = vadd.f32 %v342, %v442
    %v444 = vpop.f32.mrb[0].mxu0
    %v445 = vpop.f32.mrb[0].mxu0
    %v446 = vadd.f32 %v342, %v445
    %v447 = vpop.f32.mrb[0].mxu0
    %448 = vmatprep.mubr.bf16.mxu0 0
    %449 = vmatmul.mubr.bf16.gmra.mrb[0].mxu0 %v333
    %v450 = vpop.f32.mrb[0].mxu0
    %v451 = vadd.f32 %v342, %v450
    %v452 = vpop.f32.mrb[0].mxu0
    %v453 = vpop.f32.mrb[0].mxu0
    %v454 = vadd.f32 %v342, %v453
    %v455 = vpop.f32.mrb[0].mxu0
    %456 = vmatprep.mubr.bf16.mxu0 0
    %457 = vmatmul.mubr.bf16.gmra.mrb[0].mxu0 %v334
    %v458 = vpop.f32.mrb[0].mxu0
    %v459 = vadd.f32 %v342, %v458
    %v460 = vpop.f32.mrb[0].mxu0
    %v461 = vpop.f32.mrb[0].mxu0
    %v462 = vadd.f32 %v342, %v461
    %v463 = vpop.f32.mrb[0].mxu0
    %464 = vmatprep.mubr.bf16.mxu0 0
    %465 = vmatmul.mubr.bf16.gmra.mrb[0].mxu0 %v335
    %v466 = vpop.f32.mrb[0].mxu0
    %v467 = vadd.f32 %v342, %v466
    %v468 = vpop.f32.mrb[0].mxu0
    %v469 = vpop.f32.mrb[0].mxu0
    %v470 = vadd.f32 %v342, %v469
    %v471 = vpop.f32.mrb[0].mxu0
    %472 = vmatprep.mubr.bf16.mxu0 0
    %473 = vmatmul.mubr.bf16.gmra.mrb[0].mxu0 %v336
    %v474 = vpop.f32.mrb[0].mxu0
    %v475 = vadd.f32 %v342, %v474
    %v476 = vpop.f32.mrb[0].mxu0
    %v477 = vpop.f32.mrb[0].mxu0
    %v478 = vadd.f32 %v342, %v477
    %v479 = vpop.f32.mrb[0].mxu0
    %480 = vmatprep.mubr.bf16.mxu0 0
    %481 = vmatmul.mubr.bf16.gmra.mrb[0].mxu0 %v337
    %v482 = vpop.f32.mrb[0].mxu0
    %v483 = vadd.f32 %v342, %v482
    %v484 = vpop.f32.mrb[0].mxu0
    %v485 = vpop.f32.mrb[0].mxu0
    %v486 = vadd.f32 %v342, %v485
    %v487 = vpop.f32.mrb[0].mxu0
    %488 = vdwg.mxu0
    %v489 = vmax.f32 %v427, 0.0
    %v490 = vmax.f32 %v430, 0.0
    %v491 = vmax.f32 %v435, 0.0
    %v492 = vmax.f32 %v438, 0.0
    %v493 = vmax.f32 %v443, 0.0
    %v494 = vmax.f32 %v446, 0.0
    %v495 = vmax.f32 %v451, 0.0
    %v496 = vmax.f32 %v454, 0.0
    %v497 = vmax.f32 %v459, 0.0
    %v498 = vmax.f32 %v462, 0.0
    %v499 = vmax.f32 %v467, 0.0
    %v500 = vmax.f32 %v470, 0.0
    %v501 = vmax.f32 %v475, 0.0
    %v502 = vmax.f32 %v478, 0.0
    %v503 = vmax.f32 %v483, 0.0
    %v504 = vmax.f32 %v486, 0.0
    %v505 = vmul.f32 %v489, %v237
    %v506 = vmul.f32 %v490, %v242
    %v507 = vmul.f32 %v491, %v247
    %v508 = vmul.f32 %v492, %v252
    %v509 = vmul.f32 %v493, %v257
    %v510 = vmul.f32 %v494, %v262
    %v511 = vmul.f32 %v495, %v267
    %v512 = vmul.f32 %v496, %v272
    %v513 = vmul.f32 %v497, %v277
    %v514 = vmul.f32 %v498, %v282
    %v515 = vmul.f32 %v499, %v287
    %v516 = vmul.f32 %v500, %v292
    %v517 = vmul.f32 %v501, %v297
    %v518 = vmul.f32 %v502, %v302
    %v519 = vmul.f32 %v503, %v307
    %v520 = vmul.f32 %v504, %v312
    %v521 = vpack.c.bf16 %v506, %v505
    %v522 = vpack.c.bf16 %v508, %v507
    %v523 = vpack.c.bf16 %v510, %v509
    %v524 = vpack.c.bf16 %v512, %v511
    %v525 = vpack.c.bf16 %v514, %v513
    %v526 = vpack.c.bf16 %v516, %v515
    %v527 = vpack.c.bf16 %v518, %v517
    %v528 = vpack.c.bf16 %v520, %v519
    %v529 = vld [vmem:[%s5] sm:$0xf]
    %v530 = vld [vmem:[%s5 + $0x4] sm:$0xf]
    %v531 = vld [vmem:[%s5 + $0x8] sm:$0xf]
    %v532 = vld [vmem:[%s5 + $0xc] sm:$0xf]
    %v533 = vld [vmem:[%s5 + $0x10] sm:$0xf]
    %v534 = vld [vmem:[%s5 + $0x14] sm:$0xf]
    %v535 = vld [vmem:[%s5 + $0x18] sm:$0xf]
    %v536 = vld [vmem:[%s5 + $0x1c] sm:$0xf]
    %v537 = vld [vmem:[%s5 + $0x20] sm:$0xf]
    %v538 = vld [vmem:[%s5 + $0x24] sm:$0xf]
    %v539 = vld [vmem:[%s5 + $0x28] sm:$0xf]
    %v540 = vld [vmem:[%s5 + $0x2c] sm:$0xf]
    %v541 = vld [vmem:[%s5 + $0x30] sm:$0xf]
    %v542 = vld [vmem:[%s5 + $0x34] sm:$0xf]
    %v543 = vld [vmem:[%s5 + $0x38] sm:$0xf]
    %v544 = vld [vmem:[%s5 + $0x3c] sm:$0xf]
    %v545 = vld [vmem:[%s6] sm:$0x1]
    %546 = vmatprep.subr.bf16.mxu0 0
    %547 = vmatpush1.bf16.msra.mxu0 %v521
    %548 = vmatprep.subr.bf16.mxu0 0
    %549 = vmatpush1.bf16.msra.mxu0 %v522
    %550 = vmatprep.subr.bf16.mxu0 0
    %551 = vmatpush1.bf16.msra.mxu0 %v523
    %552 = vmatprep.subr.bf16.mxu0 0
    %553 = vmatpush1.bf16.msra.mxu0 %v524
    %554 = vmatprep.subr.bf16.mxu0 0
    %555 = vmatpush1.bf16.msra.mxu0 %v525
    %556 = vmatprep.subr.bf16.mxu0 0
    %557 = vmatpush1.bf16.msra.mxu0 %v526
    %558 = vmatprep.subr.bf16.mxu0 0
    %559 = vmatpush1.bf16.msra.mxu0 %v527
    %560 = vmatprep.subr.bf16.mxu0 0
    %561 = vmatpush1.bf16.msra.mxu0 %v528
    %562 = vmatprep.subr.bf16.mxu0 0
    %563 = vmatpush1.bf16.msra.mxu0 0
    %564 = vmatprep.subr.bf16.mxu0 0
    %565 = vmatpush1.bf16.msra.mxu0 0
    %566 = vmatprep.subr.bf16.mxu0 0
    %567 = vmatpush1.bf16.msra.mxu0 0
    %568 = vmatprep.subr.bf16.mxu0 0
    %569 = vmatpush1.bf16.msra.mxu0 0
    %570 = vmatprep.subr.bf16.mxu0 0
    %571 = vmatpush1.bf16.msra.mxu0 0
    %572 = vmatprep.subr.bf16.mxu0 0
    %573 = vmatpush1.bf16.msra.mxu0 0
    %574 = vmatprep.subr.bf16.mxu0 0
    %575 = vmatpush1.bf16.msra.mxu0 0
    %576 = vmatprep.subr.bf16.mxu0 0
    %577 = vmatpush1.bf16.msra.mxu0 0
    %578 = vmatprep.mubr.bf16.mxu0 0
    %579 = vmatmul.mubr.bf16.gmra.mrb[0].mxu0 %v32
    %v580 = vpop.f32.mrb[0].mxu0
    %v581 = vadd.f32 0.0, %v580
    %v582 = vpop.f32.mrb[0].mxu0
    %v583 = vpop.f32.mrb[0].mxu0
    %v584 = vadd.f32 0.0, %v583
    %v585 = vpop.f32.mrb[0].mxu0
    %586 = vmatprep.mubr.bf16.mxu0 0
    %587 = vmatmul.mubr.bf16.gmra.mrb[0].mxu0 %v33
    %v588 = vpop.f32.mrb[0].mxu0
    %v589 = vadd.f32 0.0, %v588
    %v590 = vpop.f32.mrb[0].mxu0
    %v591 = vpop.f32.mrb[0].mxu0
    %v592 = vadd.f32 0.0, %v591
    %v593 = vpop.f32.mrb[0].mxu0
    %594 = vmatprep.mubr.bf16.mxu0 0
    %595 = vmatmul.mubr.bf16.gmra.mrb[0].mxu0 %v34
    %v596 = vpop.f32.mrb[0].mxu0
    %v597 = vadd.f32 0.0, %v596
    %v598 = vpop.f32.mrb[0].mxu0
    %v599 = vpop.f32.mrb[0].mxu0
    %v600 = vadd.f32 0.0, %v599
    %v601 = vpop.f32.mrb[0].mxu0
    %602 = vmatprep.mubr.bf16.mxu0 0
    %603 = vmatmul.mubr.bf16.gmra.mrb[0].mxu0 %v35
    %v604 = vpop.f32.mrb[0].mxu0
    %v605 = vadd.f32 0.0, %v604
    %v606 = vpop.f32.mrb[0].mxu0
    %v607 = vpop.f32.mrb[0].mxu0
    %v608 = vadd.f32 0.0, %v607
    %v609 = vpop.f32.mrb[0].mxu0
    %610 = vmatprep.mubr.bf16.mxu0 0
    %611 = vmatmul.mubr.bf16.gmra.mrb[0].mxu0 %v36
    %v612 = vpop.f32.mrb[0].mxu0
    %v613 = vadd.f32 0.0, %v612
    %v614 = vpop.f32.mrb[0].mxu0
    %v615 = vpop.f32.mrb[0].mxu0
    %v616 = vadd.f32 0.0, %v615
    %v617 = vpop.f32.mrb[0].mxu0
    %618 = vmatprep.mubr.bf16.mxu0 0
    %619 = vmatmul.mubr.bf16.gmra.mrb[0].mxu0 %v37
    %v620 = vpop.f32.mrb[0].mxu0
    %v621 = vadd.f32 0.0, %v620
    %v622 = vpop.f32.mrb[0].mxu0
    %v623 = vpop.f32.mrb[0].mxu0
    %v624 = vadd.f32 0.0, %v623
    %v625 = vpop.f32.mrb[0].mxu0
    %626 = vmatprep.mubr.bf16.mxu0 0
    %627 = vmatmul.mubr.bf16.gmra.mrb[0].mxu0 %v38
    %v628 = vpop.f32.mrb[0].mxu0
    %v629 = vadd.f32 0.0, %v628
    %v630 = vpop.f32.mrb[0].mxu0
    %v631 = vpop.f32.mrb[0].mxu0
    %v632 = vadd.f32 0.0, %v631
    %v633 = vpop.f32.mrb[0].mxu0
    %634 = vmatprep.mubr.bf16.mxu0 0
    %635 = vmatmul.mubr.bf16.gmra.mrb[0].mxu0 %v39
    %v636 = vpop.f32.mrb[0].mxu0
    %v637 = vadd.f32 0.0, %v636
    %v638 = vpop.f32.mrb[0].mxu0
    %v639 = vpop.f32.mrb[0].mxu0
    %v640 = vadd.f32 0.0, %v639
    %v641 = vpop.f32.mrb[0].mxu0
    %642 = vdwg.mxu0
    %v643 = vmul.f32 %v581, %v237
    %v644 = vmul.f32 %v584, %v242
    %v645 = vmul.f32 %v589, %v247
    %v646 = vmul.f32 %v592, %v252
    %v647 = vmul.f32 %v597, %v257
    %v648 = vmul.f32 %v600, %v262
    %v649 = vmul.f32 %v605, %v267
    %v650 = vmul.f32 %v608, %v272
    %v651 = vmul.f32 %v613, %v277
    %v652 = vmul.f32 %v616, %v282
    %v653 = vmul.f32 %v621, %v287
    %v654 = vmul.f32 %v624, %v292
    %v655 = vmul.f32 %v629, %v297
    %v656 = vmul.f32 %v632, %v302
    %v657 = vmul.f32 %v637, %v307
    %v658 = vmul.f32 %v640, %v312
    %v659 = vpack.c.bf16 %v644, %v643
    %v660 = vpack.c.bf16 %v646, %v645
    %v661 = vpack.c.bf16 %v648, %v647
    %v662 = vpack.c.bf16 %v650, %v649
    %v663 = vpack.c.bf16 %v652, %v651
    %v664 = vpack.c.bf16 %v654, %v653
    %v665 = vpack.c.bf16 %v656, %v655
    %v666 = vpack.c.bf16 %v658, %v657
    %v668 = vlaneseq
    %v669 = vshrl.u32 %v668, 7
    %v670 = vsub.s32 0, %v669
    %v671 = vrot.slane %v545, %v670
    %v689 = vunpack.c.l.b16 %v529
    %v690 = vunpack.c.l.b16 %v530
    %v691 = vunpack.c.l.b16 %v531
    %v692 = vunpack.c.l.b16 %v532
    %v693 = vunpack.c.l.b16 %v533
    %v694 = vunpack.c.l.b16 %v534
    %v695 = vunpack.c.l.b16 %v535
    %v696 = vunpack.c.l.b16 %v536
    %v697 = vunpack.c.l.b16 %v537
    %v698 = vunpack.c.l.b16 %v538
    %v699 = vunpack.c.l.b16 %v539
    %v700 = vunpack.c.l.b16 %v540
    %v701 = vunpack.c.l.b16 %v541
    %v702 = vunpack.c.l.b16 %v542
    %v703 = vunpack.c.l.b16 %v543
    %v704 = vunpack.c.l.b16 %v544
    %v705 = vpack.c.b16 %v690, %v689
    %v706 = vpack.c.b16 %v692, %v691
    %v707 = vpack.c.b16 %v694, %v693
    %v708 = vpack.c.b16 %v696, %v695
    %v709 = vpack.c.b16 %v698, %v697
    %v710 = vpack.c.b16 %v700, %v699
    %v711 = vpack.c.b16 %v702, %v701
    %v712 = vpack.c.b16 %v704, %v703
    %721 = vmatprep.subr.bf16.mxu0 0
    %722 = vmatpush1.bf16.msra.mxu0 %v705
    %723 = vmatprep.subr.bf16.mxu0 0
    %724 = vmatpush1.bf16.msra.mxu0 %v706
    %725 = vmatprep.subr.bf16.mxu0 0
    %726 = vmatpush1.bf16.msra.mxu0 %v707
    %727 = vmatprep.subr.bf16.mxu0 0
    %728 = vmatpush1.bf16.msra.mxu0 %v708
    %729 = vmatprep.subr.bf16.mxu0 0
    %730 = vmatpush1.bf16.msra.mxu0 %v709
    %731 = vmatprep.subr.bf16.mxu0 0
    %732 = vmatpush1.bf16.msra.mxu0 %v710
    %733 = vmatprep.subr.bf16.mxu0 0
    %734 = vmatpush1.bf16.msra.mxu0 %v711
    %735 = vmatprep.subr.bf16.mxu0 0
    %736 = vmatpush1.bf16.msra.mxu0 %v712
    %737 = vmatprep.subr.bf16.mxu0 0
    %738 = vmatpush1.bf16.msra.mxu0 0
    %739 = vmatprep.subr.bf16.mxu0 0
    %740 = vmatpush1.bf16.msra.mxu0 0
    %741 = vmatprep.subr.bf16.mxu0 0
    %742 = vmatpush1.bf16.msra.mxu0 0
    %743 = vmatprep.subr.bf16.mxu0 0
    %744 = vmatpush1.bf16.msra.mxu0 0
    %745 = vmatprep.subr.bf16.mxu0 0
    %746 = vmatpush1.bf16.msra.mxu0 0
    %747 = vmatprep.subr.bf16.mxu0 0
    %748 = vmatpush1.bf16.msra.mxu0 0
    %749 = vmatprep.subr.bf16.mxu0 0
    %750 = vmatpush1.bf16.msra.mxu0 0
    %751 = vmatprep.subr.bf16.mxu0 0
    %752 = vmatpush1.bf16.msra.mxu0 0
    %753 = vmatprep.mubr.bf16.mxu0 0
    %754 = vmatmul.mubr.bf16.gmra.mrb[0].mxu0 %v659
    %v755 = vpop.f32.mrb[0].mxu0
    %v756 = vadd.f32 %v671, %v755
    %v757 = vpop.f32.mrb[0].mxu0
    %v758 = vpop.f32.mrb[0].mxu0
    %v759 = vadd.f32 %v671, %v758
    %v760 = vpop.f32.mrb[0].mxu0
    %761 = vmatprep.mubr.bf16.mxu0 0
    %762 = vmatmul.mubr.bf16.gmra.mrb[0].mxu0 %v660
    %v763 = vpop.f32.mrb[0].mxu0
    %v764 = vadd.f32 %v671, %v763
    %v765 = vpop.f32.mrb[0].mxu0
    %v766 = vpop.f32.mrb[0].mxu0
    %v767 = vadd.f32 %v671, %v766
    %v768 = vpop.f32.mrb[0].mxu0
    %769 = vmatprep.mubr.bf16.mxu0 0
    %770 = vmatmul.mubr.bf16.gmra.mrb[0].mxu0 %v661
    %v771 = vpop.f32.mrb[0].mxu0
    %v772 = vadd.f32 %v671, %v771
    %v773 = vpop.f32.mrb[0].mxu0
    %v774 = vpop.f32.mrb[0].mxu0
    %v775 = vadd.f32 %v671, %v774
    %v776 = vpop.f32.mrb[0].mxu0
    %777 = vmatprep.mubr.bf16.mxu0 0
    %778 = vmatmul.mubr.bf16.gmra.mrb[0].mxu0 %v662
    %v779 = vpop.f32.mrb[0].mxu0
    %v780 = vadd.f32 %v671, %v779
    %v781 = vpop.f32.mrb[0].mxu0
    %v782 = vpop.f32.mrb[0].mxu0
    %v783 = vadd.f32 %v671, %v782
    %v784 = vpop.f32.mrb[0].mxu0
    %785 = vmatprep.mubr.bf16.mxu0 0
    %786 = vmatmul.mubr.bf16.gmra.mrb[0].mxu0 %v663
    %v787 = vpop.f32.mrb[0].mxu0
    %v788 = vadd.f32 %v671, %v787
    %v789 = vpop.f32.mrb[0].mxu0
    %v790 = vpop.f32.mrb[0].mxu0
    %v791 = vadd.f32 %v671, %v790
    %v792 = vpop.f32.mrb[0].mxu0
    %793 = vmatprep.mubr.bf16.mxu0 0
    %794 = vmatmul.mubr.bf16.gmra.mrb[0].mxu0 %v664
    %v795 = vpop.f32.mrb[0].mxu0
    %v796 = vadd.f32 %v671, %v795
    %v797 = vpop.f32.mrb[0].mxu0
    %v798 = vpop.f32.mrb[0].mxu0
    %v799 = vadd.f32 %v671, %v798
    %v800 = vpop.f32.mrb[0].mxu0
    %801 = vmatprep.mubr.bf16.mxu0 0
    %802 = vmatmul.mubr.bf16.gmra.mrb[0].mxu0 %v665
    %v803 = vpop.f32.mrb[0].mxu0
    %v804 = vadd.f32 %v671, %v803
    %v805 = vpop.f32.mrb[0].mxu0
    %v806 = vpop.f32.mrb[0].mxu0
    %v807 = vadd.f32 %v671, %v806
    %v808 = vpop.f32.mrb[0].mxu0
    %809 = vmatprep.mubr.bf16.mxu0 0
    %810 = vmatmul.mubr.bf16.gmra.mrb[0].mxu0 %v666
    %v811 = vpop.f32.mrb[0].mxu0
    %v812 = vadd.f32 %v671, %v811
    %v813 = vpop.f32.mrb[0].mxu0
    %v814 = vpop.f32.mrb[0].mxu0
    %v815 = vadd.f32 %v671, %v814
    %v816 = vpop.f32.mrb[0].mxu0
    %817 = vdwg.mxu0
    %818 = vst [vmem:[#allocation2] sm:$0xff] %v756
    %819 = vst [vmem:[#allocation2 + $0x8] sm:$0xff] %v759
    %820 = vst [vmem:[#allocation2 + $0x10] sm:$0xff] %v764
    %821 = vst [vmem:[#allocation2 + $0x18] sm:$0xff] %v767
    %822 = vst [vmem:[#allocation2 + $0x20] sm:$0xff] %v772
    %823 = vst [vmem:[#allocation2 + $0x28] sm:$0xff] %v775
    %824 = vst [vmem:[#allocation2 + $0x30] sm:$0xff] %v780
    %825 = vst [vmem:[#allocation2 + $0x38] sm:$0xff] %v783
    %826 = vst [vmem:[#allocation2 + $0x40] sm:$0xff] %v788
    %827 = vst [vmem:[#allocation2 + $0x48] sm:$0xff] %v791
    %828 = vst [vmem:[#allocation2 + $0x50] sm:$0xff] %v796
    %829 = vst [vmem:[#allocation2 + $0x58] sm:$0xff] %v799
    %830 = vst [vmem:[#allocation2 + $0x60] sm:$0xff] %v804
    %831 = vst [vmem:[#allocation2 + $0x68] sm:$0xff] %v807
    %832 = vst [vmem:[#allocation2 + $0x70] sm:$0xff] %v812
    %833 = vst [vmem:[#allocation2 + $0x78] sm:$0xff] %v815
    // Predicated region
    $region30: #{gnn_forward_prepared.1} parent=1 // pred_check
      _
    $region31: #{gnn_forward_prepared.1} parent=1 // pred_check_branch
      %835 = sbr.rel (0) target = $region33
    $region32: #{gnn_forward_prepared.1} parent=1 // pred_region
      %s837 = ssub.s32 2048, 2048
      %838 = vsyncadd [#allocation3], %s837
      %s839 = sshll.u32 [#allocation2], 4
      %s840 = int_to_ptr.vmem [resolvable:$true] %s839
      %845 = dma.vmem_to_hbm [thread:$0]  %s840, 2048, %s7, [#allocation3], 128, 128, 8
    $region33: #{gnn_forward_prepared.1} parent=1 // pred_fallthru
      _
    // Predicated region
    $region34: #{gnn_forward_prepared.1} parent=1 // pred_check
      _
    $region35: #{gnn_forward_prepared.1} parent=1 // pred_check_branch
      %847 = sbr.rel (0) target = $region37
    $region36: #{gnn_forward_prepared.1} parent=1 // pred_region
      %848 = dma.done [#allocation3], 2048
    $region37: #{gnn_forward_prepared.1} parent=1 // pred_fallthru
      _
    %849 = vsyncpa [#allocation3], 1

</llo_original>
